<compile_context>
chip_gen: v6e
topology: v6e:2x2x1
jax: 0.10.0
libtpu: 0.0.40
codegen_flags: <defaults>
</compile_context>

<pallas_src>
from functools import partial

import numpy as np
import jax
import jax.numpy as jnp
from jax.experimental import pallas as pl
from jax.experimental.pallas import tpu as pltpu


def _round_up(a: int, b: int) -> int:
    return -(-a // b) * b


def _cdiv(a: int, b: int) -> int:
    return -(-a // b)


_NUM_CORES_CACHE = None


def _num_tensorcores() -> int:
    """Best-effort TensorCore count (1 on v5e/v6e, 2 on v7x); never raises."""
    global _NUM_CORES_CACHE
    if _NUM_CORES_CACHE is None:
        cores = 1
        try:
            info = pltpu.get_tpu_info()
            for name in ("num_cores", "core_count", "tensorcore_count", "num_tensorcores"):
                v = getattr(info, name, None)
                if isinstance(v, int) and v > 0:
                    cores = v
                    break
        except Exception:
            cores = 1
        _NUM_CORES_CACHE = cores
    return _NUM_CORES_CACHE


def _annealed_sin_kernel(x_ref, sel_ref, par_ref, out_ref, *, include_input):
    """x_ref: (TB, P*D); sel_ref: (P*D, P*OUTF) 0/1; par_ref: (4, P*OUTF);
    out_ref: (TB, P*OUTF).  par rows: 0=freq, 1=phase, 2=window, 3=keep(raw x)."""
    x = x_ref[...].astype(jnp.float32)                       # (TB, PD)
    sel = sel_ref[...]                                       # (PD, POUT) 0/1 f32
    # Lane "broadcast" of each coordinate into its term columns, on the MXU.
    # sel is 0/1 and precision is HIGHEST, so xb is an exact column-gather of x.
    xb = jnp.dot(x, sel,
                 preferred_element_type=jnp.float32,
                 precision=jax.lax.Precision.HIGHEST)        # (TB, POUT)
    par = par_ref[...]                                       # (4, POUT)
    freq = par[0:1, :]
    phase = par[1:2, :]
    win = par[2:3, :]
    ang = xb * freq + phase                                  # VPU (cos = sin(+pi/2))
    feats = jnp.sin(ang) * win                               # one dense EUP pass + VPU
    if include_input:
        keep = par[3:4, :]
        feats = jnp.where(keep > 0.5, xb, feats)             # raw-x passthrough columns
    out_ref[...] = feats.astype(out_ref.dtype)               # single full-width store


class AnnealedSinusoidalEmbedderPallas:
    def __init__(self, input_dim, N_freqs, max_freq_log2, min_freq_log2=0.0,
                 log_sampling=True, include_input=True, alpha=1.0, out_dtype=None):
        self.input_dim = int(input_dim)
        self.N_freqs = int(N_freqs)
        self.include_input = bool(include_input)
        self.out_dtype = out_dtype  # None -> same dtype as x (matches PyTorch)
        self.out_features = (self.input_dim if include_input else 0) \
            + self.input_dim * self.N_freqs * 2

        if log_sampling:
            freq_np = (2.0 ** np.linspace(min_freq_log2, max_freq_log2,
                                          self.N_freqs)).astype(np.float32)
        else:
            freq_np = np.linspace(2.0 ** min_freq_log2, 2.0 ** max_freq_log2,
                                  self.N_freqs).astype(np.float32)
        self._freq_np = freq_np
        self.freq_bands = jnp.asarray(freq_np)

        self._sel_cache = {}      # P -> (PD, POUT) 0/1 selection matrix (np)
        self._row_cache = {}      # P -> (freq_row, phase_row, keep_row) np
        self.set_cosine_easing_window(alpha)

    # ------------------------------------------------------------------ window
    def set_cosine_easing_window(self, alpha: float):
        """Runtime-updatable: the window is a kernel *operand*, so changing
        alpha does NOT trigger a recompile."""
        # TODO(synk): accept a traced jnp scalar here if alpha is annealed
        # inside a jitted training step.
        self.alpha = float(alpha)
        nb = self.N_freqs
        raw = self.alpha * nb - np.arange(nb, dtype=np.float64)
        win = 0.5 * (1.0 + np.cos(np.pi * np.clip(raw, 0.0, 1.0) + np.pi))
        self.window = jnp.asarray(win.astype(np.float32))

    # ------------------------------------------------------------- host tables
    def _point_rows(self):
        D, F = self.input_dim, self.N_freqs
        T = (1 if self.include_input else 0) + 2 * F
        OUTF = T * D
        freq_row = np.ones((OUTF,), np.float32)
        phase_row = np.zeros((OUTF,), np.float32)
        keep_row = np.zeros((OUTF,), np.float32)
        base = D if self.include_input else 0
        if self.include_input:
            keep_row[:D] = 1.0
        for f in range(F):
            s = base + 2 * f * D
            freq_row[s:s + 2 * D] = self._freq_np[f]
            phase_row[s + D:s + 2 * D] = np.float32(np.pi / 2.0)   # cos block
        return freq_row, phase_row, keep_row

    def _tables(self, P: int):
        D = self.input_dim
        T = (1 if self.include_input else 0) + 2 * self.N_freqs
        if P not in self._sel_cache:
            sel_pt = np.tile(np.eye(D, dtype=np.float32), (1, T))          # (D, OUTF)
            self._sel_cache[P] = np.kron(np.eye(P, dtype=np.float32), sel_pt)
            fr, ph, kp = self._point_rows()
            self._row_cache[P] = (np.tile(fr, P), np.tile(ph, P), np.tile(kp, P))
        return self._sel_cache[P], self._row_cache[P]

    def _window_row(self, P: int):
        D = self.input_dim
        w = jnp.repeat(self.window.astype(jnp.float32), 2 * D)             # (2FD,)
        if self.include_input:
            w = jnp.concatenate([jnp.ones((D,), jnp.float32), w])
        return jnp.tile(w, P)                                               # (P*OUTF,)

    # ----------------------------------------------------------------- forward
    def __call__(self, x, *, tile_rows=None):
        *batch, D = x.shape
        assert D == self.input_dim
        N = int(np.prod(batch)) if batch else 1
        OUTF = self.out_features
        out_dtype = jnp.dtype(self.out_dtype) if self.out_dtype is not None else x.dtype

        # ---- pack P points per kernel row (free reshapes; lane-dense sin pass
        #      & stores, smaller VMEM per row).  Cap P=8 so the MXU broadcast
        #      stays far below the HBM write time on all generations. --------
        P = 1
        for cand in (8, 4, 2):
            if (N % cand == 0 and N >= 8 * cand
                    and cand * D <= 256 and cand * OUTF <= 2048):
                P = cand
                break
        NP, PD, POUT = N // P, P * D, P * OUTF

        sel_np, (fr, ph, kp) = self._tables(P)
        params = jnp.stack([jnp.asarray(fr), jnp.asarray(ph),
                            self._window_row(P), jnp.asarray(kp)], axis=0)  # (4, POUT)
        sel = jnp.asarray(sel_np)                                           # (PD, POUT)

        # ---- row-tile size: ~8 MiB of (in+out) VMEM per buffer pair --------
        x_item = jnp.dtype(x.dtype).itemsize
        o_item = jnp.dtype(out_dtype).itemsize
        row_bytes = _round_up(POUT, 128) * o_item + _round_up(PD, 128) * x_item
        TB = max(8, min(1 << 13, ((8 << 20) // row_bytes) // 8 * 8))
        if tile_rows is not None:
            TB = max(8, (int(tile_rows) // 8) * 8)
        if NP <= TB:
            TB = NP                       # single full block (always a legal block)
        steps = _cdiv(NP, TB)
        if steps > 1 and _num_tensorcores() >= 2 and steps % 2 == 1:
            TB2 = max(8, _round_up(_cdiv(NP, steps + 1), 8))
            if _cdiv(NP, TB2) % 2 == 0:
                TB = TB2
                steps = _cdiv(NP, TB)

        x2 = x.reshape(NP, PD)            # free contiguous reshape, no HBM copy

        kernel = partial(_annealed_sin_kernel, include_input=self.include_input)
        cost = pl.CostEstimate(
            flops=int(2 * NP * PD * POUT + 4 * N * OUTF),
            transcendentals=int(N * OUTF),
            bytes_accessed=int(N * D * x_item + N * OUTF * o_item
                               + sel.size * 4 + params.size * 4),
        )

        out2 = pl.pallas_call(
            kernel,
            out_shape=jax.ShapeDtypeStruct((NP, POUT), out_dtype),
            grid=(steps,),
            in_specs=[
                pl.BlockSpec((TB, PD), lambda i: (i, 0)),
                pl.BlockSpec((int(sel.shape[0]), int(sel.shape[1])), lambda i: (0, 0)),
                pl.BlockSpec((4, POUT), lambda i: (0, 0)),
            ],
            out_specs=pl.BlockSpec((TB, POUT), lambda i: (i, 0)),
            compiler_params=pltpu.CompilerParams(
                dimension_semantics=("parallel",),
                vmem_limit_bytes=32 * 1024 * 1024),
            cost_estimate=cost,
        )(x2, sel, params)

        out = out2.reshape(N, OUTF)       # free contiguous reshape
        return out.reshape(*batch, OUTF)


def reference_forward(x, freq_bands, window, include_input=True):
    """Pure-JAX mirror of the PyTorch forward (all its branches reduce to this
    for finite inputs)."""
    out = []
    if include_input:
        out.append(x)
    angles = x[..., None, :] * freq_bands[:, None]                   # [..., F, D]
    angles = jnp.stack([angles, angles + np.pi / 2.0], axis=-2)      # [..., F, 2, D]
    angles = angles.reshape(*angles.shape[:-2], -1)                  # [..., F, 2D]
    feats = jnp.sin(angles) * window[:, None]
    out.append(feats.reshape(*feats.shape[:-2], -1))                 # [..., 2FD]
    return jnp.concatenate(out, axis=-1)


if __name__ == "__main__":
    key = jax.random.PRNGKey(0)
    k1, k2, k3 = jax.random.split(key, 3)
    D, F = 4, 6

    # Case 1: small, divisible, partially-open window (two zero bands).
    emb = AnnealedSinusoidalEmbedderPallas(D, F, max_freq_log2=5, min_freq_log2=0.0,
                                           log_sampling=True, include_input=True,
                                           alpha=0.65)
    x1 = jax.random.uniform(k1, (2, 16, D), jnp.float32, minval=-1.0, maxval=1.0)
    y1 = jax.block_until_ready(emb(x1))
    assert y1.shape == (2, 16, emb.out_features), y1.shape
    r1 = reference_forward(x1, emb.freq_bands, emb.window, include_input=True)
    np.testing.assert_allclose(np.asarray(y1), np.asarray(r1), rtol=1e-5, atol=2e-5)

    # Runtime annealing update: window is a kernel operand -> no recompile.
    emb.set_cosine_easing_window(0.30)
    y1b = jax.block_until_ready(emb(x1))
    r1b = reference_forward(x1, emb.freq_bands, emb.window, include_input=True)
    np.testing.assert_allclose(np.asarray(y1b), np.asarray(r1b), rtol=1e-5, atol=2e-5)

    # Case 2: ragged N (pack falls back to P=2), include_input=False, alpha=1.
    emb2 = AnnealedSinusoidalEmbedderPallas(3, F, max_freq_log2=5, include_input=False,
                                            alpha=1.0)
    x2 = jax.random.uniform(k2, (3, 10, 3), jnp.float32, minval=-1.0, maxval=1.0)
    y2 = jax.block_until_ready(emb2(x2))
    assert y2.shape == (3, 10, emb2.out_features), y2.shape
    r2 = reference_forward(x2, emb2.freq_bands, emb2.window, include_input=False)
    np.testing.assert_allclose(np.asarray(y2), np.asarray(r2), rtol=1e-5, atol=2e-5)

    # Case 3: multi-step grid with a partial boundary block (tile_rows override)
    # + bf16 output (halved HBM writeback).
    emb3 = AnnealedSinusoidalEmbedderPallas(D, F, max_freq_log2=5, include_input=True,
                                            alpha=0.8, out_dtype=jnp.bfloat16)
    x3 = jax.random.uniform(k3, (4080, D), jnp.float32, minval=-1.0, maxval=1.0)
    y3 = jax.block_until_ready(emb3(x3, tile_rows=16))
    assert y3.shape == (4080, emb3.out_features) and y3.dtype == jnp.bfloat16
    r3 = reference_forward(x3, emb3.freq_bands, emb3.window, include_input=True)
    np.testing.assert_allclose(np.asarray(y3, dtype=np.float32), np.asarray(r3),
                               rtol=2e-2, atol=2e-2)

    print("KERNEL_OK")
</pallas_src>

<mosaic_0001>
module attributes {stable_mosaic.version = 11 : i64} {
  func.func @_annealed_sin_kernel(%arg0: i32, %arg1: memref<8x16xf32, #tpu.memory_space<vmem>>, %arg2: memref<16x208xf32, #tpu.memory_space<vmem>>, %arg3: memref<4x208xf32, #tpu.memory_space<vmem>>, %arg4: memref<8x208xf32, #tpu.memory_space<vmem>>) attributes {dimension_semantics = [#tpu.dimension_semantics<parallel>], iteration_bounds = array<i64: 1>, scalar_prefetch = 0 : i64, scratch_operands = 0 : i64, tpu.core_type = #tpu.core_type<tc>, window_params = [{transform_indices = @transform_0, window_bounds = array<i64: 8, 16>}, {pipeline_mode = #tpu.pipeline_mode<synchronous>, transform_indices = @transform_1, window_bounds = array<i64: 16, 208>}, {pipeline_mode = #tpu.pipeline_mode<synchronous>, transform_indices = @transform_2, window_bounds = array<i64: 4, 208>}, {transform_indices = @transform_3, window_bounds = array<i64: 8, 208>}]} {
    %c0 = arith.constant 0 : index
    %c0_0 = arith.constant 0 : index
    %0 = vector.load %arg1[%c0, %c0_0] : memref<8x16xf32, #tpu.memory_space<vmem>>, vector<8x16xf32>
    %c0_1 = arith.constant 0 : index
    %c0_2 = arith.constant 0 : index
    %1 = vector.load %arg2[%c0_1, %c0_2] : memref<16x208xf32, #tpu.memory_space<vmem>>, vector<16x208xf32>
    %cst = arith.constant dense<0.000000e+00> : vector<8x208xf32>
    %2 = tpu.matmul %0, %1, %cst {dimension_numbers = #tpu.dot_dimension_numbers<[1], [0], [0], [1], [0, 0, 1, 1], [], []>, precision = #tpu.contract_precision<fp32>} : vector<8x16xf32>, vector<16x208xf32>, vector<8x208xf32> -> vector<8x208xf32>
    %c0_3 = arith.constant 0 : index
    %c0_4 = arith.constant 0 : index
    %3 = vector.load %arg3[%c0_3, %c0_4] : memref<4x208xf32, #tpu.memory_space<vmem>>, vector<4x208xf32>
    %4 = vector.extract_strided_slice %3 {offsets = [0, 0], sizes = [1, 208], strides = [1, 1]} : vector<4x208xf32> to vector<1x208xf32>
    %5 = vector.extract_strided_slice %3 {offsets = [1, 0], sizes = [1, 208], strides = [1, 1]} : vector<4x208xf32> to vector<1x208xf32>
    %6 = vector.extract_strided_slice %3 {offsets = [2, 0], sizes = [1, 208], strides = [1, 1]} : vector<4x208xf32> to vector<1x208xf32>
    %7 = vector.broadcast %4 : vector<1x208xf32> to vector<8x208xf32>
    %8 = arith.mulf %2, %7 : vector<8x208xf32>
    %9 = vector.broadcast %5 : vector<1x208xf32> to vector<8x208xf32>
    %10 = arith.addf %8, %9 : vector<8x208xf32>
    %11 = math.sin %10 : vector<8x208xf32>
    %12 = vector.broadcast %6 : vector<1x208xf32> to vector<8x208xf32>
    %13 = arith.mulf %11, %12 : vector<8x208xf32>
    %14 = vector.extract_strided_slice %3 {offsets = [3, 0], sizes = [1, 208], strides = [1, 1]} : vector<4x208xf32> to vector<1x208xf32>
    %cst_5 = arith.constant 5.000000e-01 : f32
    %15 = vector.broadcast %cst_5 : f32 to vector<1x208xf32>
    %16 = arith.cmpf ogt, %14, %15 : vector<1x208xf32>
    %17 = vector.shape_cast %16 : vector<1x208xi1> to vector<1x208xi1>
    %18 = vector.broadcast %17 : vector<1x208xi1> to vector<8x208xi1>
    %19 = arith.select %18, %2, %13 : vector<8x208xi1>, vector<8x208xf32>
    %c0_6 = arith.constant 0 : index
    %c0_7 = arith.constant 0 : index
    %20 = vector.load %arg4[%c0_6, %c0_7] : memref<8x208xf32, #tpu.memory_space<vmem>>, vector<8x208xf32>
    tpu.vector_store %arg4[%c0_6, %c0_7], %19 {strides = array<i32>} : memref<8x208xf32, #tpu.memory_space<vmem>>, vector<8x208xf32>,
    return
  }
  func.func @transform_0(%arg0: i32) -> (i32, i32) {
    %c0_i32 = arith.constant 0 : i32
    %c0_i32_0 = arith.constant 0 : i32
    return %arg0, %c0_i32 : i32, i32
  }
  func.func @transform_1(%arg0: i32) -> (i32, i32) {
    %c0_i32 = arith.constant 0 : i32
    %c0_i32_0 = arith.constant 0 : i32
    %c0_i32_1 = arith.constant 0 : i32
    return %c0_i32, %c0_i32_0 : i32, i32
  }
  func.func @transform_2(%arg0: i32) -> (i32, i32) {
    %c0_i32 = arith.constant 0 : i32
    %c0_i32_0 = arith.constant 0 : i32
    %c0_i32_1 = arith.constant 0 : i32
    return %c0_i32, %c0_i32_0 : i32, i32
  }
  func.func @transform_3(%arg0: i32) -> (i32, i32) {
    %c0_i32 = arith.constant 0 : i32
    %c0_i32_0 = arith.constant 0 : i32
    return %arg0, %c0_i32 : i32, i32
  }
}

</mosaic_0001>

<llo_original>
// kernel: tpu_custom_call.1
$region0: #{tpu_custom_call.1}
  #allocation0 [shape = 'u32[]', space=smem, size = 0x4, offset = 0x4, fixed_abs, tag = 'smem constant byte address 0x4 - core index']
  #allocation1 [shape = 'u32[144,128]{1,0:T(1,128)}', space=vmem, size = 0x12000, scoped, tag = 'internal scratch']
  %s0 = inlined_call_operand.hbm [shape: f32[8,16], index: 0, kind: input, shape index: {}]
  %s1 = inlined_call_operand.hbm [shape: f32[16,208], index: 1, kind: input, shape index: {}]
  %s2 = inlined_call_operand.hbm [shape: f32[4,208], index: 2, kind: input, shape index: {}]
  %s3 = inlined_call_operand.hbm [shape: f32[8,208], index: 3, kind: output, shape index: {}]
  %s4 = sld [smem:[#allocation0]]
  $region34: #{tpu_custom_call.1} parent=0
    _
  %s6 = ssub.s32 1, %s4
  %s7 = scalar_select 0, %s6, %s4
  $region1: #{tpu_custom_call.1} parent=0
    #allocation2 [shape = 'u8[4096]{0}', space=vmem, size = 0x1000, scoped, tag = 'input window, operand 0, single buffered']
    #allocation3 [shape = 's32[1]{0}', space=sflag, size = 0x4, scoped, tag = 'scoped memory for tpu_custom_call.1']
    #allocation4 [shape = 's32[1]{0}', space=sflag, size = 0x4, scoped, tag = 'scoped memory for tpu_custom_call.1']
    #allocation5 [shape = 'u8[16384]{0}', space=vmem, size = 0x4000, scoped, tag = 'input window, operand 1, single buffered']
    #allocation6 [shape = 's32[1]{0}', space=sflag, size = 0x4, scoped, tag = 'scoped memory for tpu_custom_call.1']
    #allocation7 [shape = 'u8[4096]{0}', space=vmem, size = 0x1000, scoped, tag = 'input window, operand 2, single buffered']
    #allocation8 [shape = 'u8[8192]{0}', space=vmem, size = 0x2000, scoped, tag = 'output window, operand 0, single buffered']
    %8 = vsyncpa [#allocation3], 0
    %9 = vsyncpa [#allocation6], 0
    %10 = vsyncpa [#allocation4], 0
    // Predicated region
    $region2: #{tpu_custom_call.1} parent=1 // pred_check
      _
    $region3: #{tpu_custom_call.1} parent=1 // pred_check_branch
      %12 = sbr.rel (0) target = $region5
    $region4: #{tpu_custom_call.1} parent=1 // pred_region
      %s14 = ssub.s32 128, 128
      %15 = vsyncadd [#allocation3], %s14
      %s17 = sshll.u32 [#allocation2], 4
      %s18 = int_to_ptr.vmem [resolvable:$true] %s17
      %20 = dma.hbm_to_vmem [thread:$0]  %s0, 128, %s18, [#allocation3]
    $region5: #{tpu_custom_call.1} parent=1 // pred_fallthru
      _
    // Predicated region
    $region6: #{tpu_custom_call.1} parent=1 // pred_check
      _
    $region7: #{tpu_custom_call.1} parent=1 // pred_check_branch
      %22 = sbr.rel (0) target = $region9
    $region8: #{tpu_custom_call.1} parent=1 // pred_region
      %s24 = ssub.s32 512, 512
      %25 = vsyncadd [#allocation6], %s24
      %s26 = sshll.u32 [#allocation5], 4
      %s27 = int_to_ptr.vmem [resolvable:$true] %s26
      %32 = dma.hbm_to_vmem [thread:$0]  %s1, 512, %s27, [#allocation6], 256, 256, 16
    $region9: #{tpu_custom_call.1} parent=1 // pred_fallthru
      _
    // Predicated region
    $region10: #{tpu_custom_call.1} parent=1 // pred_check
      _
    $region11: #{tpu_custom_call.1} parent=1 // pred_check_branch
      %34 = sbr.rel (0) target = $region13
    $region12: #{tpu_custom_call.1} parent=1 // pred_region
      %s36 = ssub.s32 128, 128
      %37 = vsyncadd [#allocation6], %s36
      %s39 = sshll.u32 [#allocation7], 4
      %s40 = int_to_ptr.vmem [resolvable:$true] %s39
      %42 = dma.hbm_to_vmem [thread:$0]  %s2, 128, %s40, [#allocation6]
    $region13: #{tpu_custom_call.1} parent=1 // pred_fallthru
      _
    // Predicated region
    $region14: #{tpu_custom_call.1} parent=1 // pred_check
      _
    $region15: #{tpu_custom_call.1} parent=1 // pred_check_branch
      %44 = sbr.rel (0) target = $region17
    $region16: #{tpu_custom_call.1} parent=1 // pred_region
      %45 = dma.done [#allocation3], 128
    $region17: #{tpu_custom_call.1} parent=1 // pred_fallthru
      _
    // Predicated region
    $region18: #{tpu_custom_call.1} parent=1 // pred_check
      _
    $region19: #{tpu_custom_call.1} parent=1 // pred_check_branch
      %47 = sbr.rel (0) target = $region21
    $region20: #{tpu_custom_call.1} parent=1 // pred_region
      %48 = dma.done [#allocation6], 512
    $region21: #{tpu_custom_call.1} parent=1 // pred_fallthru
      _
    // Predicated region
    $region22: #{tpu_custom_call.1} parent=1 // pred_check
      _
    $region23: #{tpu_custom_call.1} parent=1 // pred_check_branch
      %50 = sbr.rel (0) target = $region25
    $region24: #{tpu_custom_call.1} parent=1 // pred_region
      %51 = dma.done [#allocation6], 128
    $region25: #{tpu_custom_call.1} parent=1 // pred_fallthru
      _
    %v52 = vld [vmem:[#allocation2] sm:$0xff]
    %v53 = vld [vmem:[#allocation5] sm:$0xff]
    %v54 = vld [vmem:[#allocation5 + $0x8] sm:$0xff]
    %v55 = vld [vmem:[#allocation5 + $0x10] sm:$0xff]
    %v56 = vld [vmem:[#allocation5 + $0x18] sm:$0xff]
    %vm57 = vcmask 130048
    %v59 = vsel %vm57, %v52, 0
    %61 = vmatprep.subr.mxu0 0.0
    %62 = vmatpush1.msra.mxu0 0.0
    %63 = vmatprep.subr.mxu0 0.0
    %64 = vmatpush1.msra.mxu0 0.0
    %65 = vmatprep.subr.mxu0 0.0
    %66 = vmatpush1.msra.mxu0 0.0
    %67 = vmatprep.subr.mxu0 0.0
    %68 = vmatpush1.msra.mxu0 0.0
    %69 = vmatprep.subr.mxu0 0.0
    %70 = vmatpush1.msra.mxu0 0.0
    %71 = vmatprep.subr.mxu0 0.0
    %72 = vmatpush1.msra.mxu0 0.0
    %73 = vmatprep.subr.mxu0 0.0
    %74 = vmatpush1.msra.mxu0 0.0
    %75 = vmatprep.subr.mxu0 0.0
    %76 = vmatpush1.msra.mxu0 0.0
    %77 = vmatprep.subr.mxu0 0.0
    %78 = vmatpush1.msra.mxu0 0.0
    %79 = vmatprep.subr.mxu0 0.0
    %80 = vmatpush1.msra.mxu0 0.0
    %81 = vmatprep.subr.mxu0 0.0
    %82 = vmatpush1.msra.mxu0 0.0
    %83 = vmatprep.subr.mxu0 0.0
    %84 = vmatpush1.msra.mxu0 0.0
    %85 = vmatprep.subr.mxu0 0.0
    %86 = vmatpush1.msra.mxu0 0.0
    %87 = vmatprep.subr.mxu0 0.0
    %88 = vmatpush1.msra.mxu0 0.0
    %v89 = vand.u32 %v56, 4294901760
    %90 = vmatprep.subr.mxu0 %v89
    %v91 = vand.u32 %v55, 4294901760
    %92 = vmatpush1.msra.mxu0 %v91
    %v93 = vand.u32 %v54, 4294901760
    %94 = vmatprep.subr.mxu0 %v93
    %v95 = vand.u32 %v53, 4294901760
    %96 = vmatpush1.msra.mxu0 %v95
    %97 = vmatprep.subr.mxu0 0.0
    %98 = vmatpush2.msra.mxu0 0.0
    %99 = vmatprep.subr.mxu0 0.0
    %100 = vmatpush2.msra.mxu0 0.0
    %101 = vmatprep.subr.mxu0 0.0
    %102 = vmatpush2.msra.mxu0 0.0
    %103 = vmatprep.subr.mxu0 0.0
    %104 = vmatpush2.msra.mxu0 0.0
    %105 = vmatprep.subr.mxu0 0.0
    %106 = vmatpush2.msra.mxu0 0.0
    %107 = vmatprep.subr.mxu0 0.0
    %108 = vmatpush2.msra.mxu0 0.0
    %109 = vmatprep.subr.mxu0 0.0
    %110 = vmatpush2.msra.mxu0 0.0
    %111 = vmatprep.subr.mxu0 0.0
    %112 = vmatpush2.msra.mxu0 0.0
    %113 = vmatprep.subr.mxu0 0.0
    %114 = vmatpush2.msra.mxu0 0.0
    %115 = vmatprep.subr.mxu0 0.0
    %116 = vmatpush2.msra.mxu0 0.0
    %117 = vmatprep.subr.mxu0 0.0
    %118 = vmatpush2.msra.mxu0 0.0
    %119 = vmatprep.subr.mxu0 0.0
    %120 = vmatpush2.msra.mxu0 0.0
    %121 = vmatprep.subr.mxu0 0.0
    %122 = vmatpush2.msra.mxu0 0.0
    %123 = vmatprep.subr.mxu0 0.0
    %124 = vmatpush2.msra.mxu0 0.0
    %125 = vmatprep.subr.mxu0 0.0
    %126 = vmatpush2.msra.mxu0 0.0
    %127 = vmatprep.subr.mxu0 0.0
    %128 = vmatpush2.msra.mxu0 0.0
    %129 = vmatprep.mubr.f32.mxu0 0.0
    %v130 = vand.u32 %v59, 4294901760
    %v131 = vsub.f32 %v59, %v130
    %v132 = vand.u32 %v131, 4294901760
    %v133 = vsub.f32 %v131, %v132
    %v134 = vand.u32 %v133, 4294901760
    %135 = vmatmul.mubr.f32.gmra.mxu0 %v134
    %v136 = vpop.f32.mrf.mxu0
    %v137 = vadd.f32 0.0, %v136
    %v138 = vpop.f32.mrf.mxu0
    %v139 = vadd.f32 0.0, %v138
    %140 = vdwg.mxu0
    %141 = vmatprep.subr.mxu0 0.0
    %142 = vmatpush1.msra.mxu0 0.0
    %143 = vmatprep.subr.mxu0 0.0
    %144 = vmatpush1.msra.mxu0 0.0
    %145 = vmatprep.subr.mxu0 0.0
    %146 = vmatpush1.msra.mxu0 0.0
    %147 = vmatprep.subr.mxu0 0.0
    %148 = vmatpush1.msra.mxu0 0.0
    %149 = vmatprep.subr.mxu0 0.0
    %150 = vmatpush1.msra.mxu0 0.0
    %151 = vmatprep.subr.mxu0 0.0
    %152 = vmatpush1.msra.mxu0 0.0
    %153 = vmatprep.subr.mxu0 0.0
    %154 = vmatpush1.msra.mxu0 0.0
    %155 = vmatprep.subr.mxu0 0.0
    %156 = vmatpush1.msra.mxu0 0.0
    %157 = vmatprep.subr.mxu0 0.0
    %158 = vmatpush1.msra.mxu0 0.0
    %159 = vmatprep.subr.mxu0 0.0
    %160 = vmatpush1.msra.mxu0 0.0
    %161 = vmatprep.subr.mxu0 0.0
    %162 = vmatpush1.msra.mxu0 0.0
    %163 = vmatprep.subr.mxu0 0.0
    %164 = vmatpush1.msra.mxu0 0.0
    %165 = vmatprep.subr.mxu0 0.0
    %166 = vmatpush1.msra.mxu0 0.0
    %167 = vmatprep.subr.mxu0 0.0
    %168 = vmatpush1.msra.mxu0 0.0
    %v169 = vand.u32 %v56, 4294901760
    %v170 = vsub.f32 %v56, %v169
    %v171 = vand.u32 %v170, 4294901760
    %v172 = vsub.f32 %v170, %v171
    %v173 = vand.u32 %v172, 4294901760
    %174 = vmatprep.subr.mxu0 %v173
    %v175 = vand.u32 %v55, 4294901760
    %v176 = vsub.f32 %v55, %v175
    %v177 = vand.u32 %v176, 4294901760
    %v178 = vsub.f32 %v176, %v177
    %v179 = vand.u32 %v178, 4294901760
    %180 = vmatpush1.msra.mxu0 %v179
    %v181 = vand.u32 %v54, 4294901760
    %v182 = vsub.f32 %v54, %v181
    %v183 = vand.u32 %v182, 4294901760
    %v184 = vsub.f32 %v182, %v183
    %v185 = vand.u32 %v184, 4294901760
    %186 = vmatprep.subr.mxu0 %v185
    %v187 = vand.u32 %v53, 4294901760
    %v188 = vsub.f32 %v53, %v187
    %v189 = vand.u32 %v188, 4294901760
    %v190 = vsub.f32 %v188, %v189
    %v191 = vand.u32 %v190, 4294901760
    %192 = vmatpush1.msra.mxu0 %v191
    %193 = vmatprep.subr.mxu0 0.0
    %194 = vmatpush2.msra.mxu0 0.0
    %195 = vmatprep.subr.mxu0 0.0
    %196 = vmatpush2.msra.mxu0 0.0
    %197 = vmatprep.subr.mxu0 0.0
    %198 = vmatpush2.msra.mxu0 0.0
    %199 = vmatprep.subr.mxu0 0.0
    %200 = vmatpush2.msra.mxu0 0.0
    %201 = vmatprep.subr.mxu0 0.0
    %202 = vmatpush2.msra.mxu0 0.0
    %203 = vmatprep.subr.mxu0 0.0
    %204 = vmatpush2.msra.mxu0 0.0
    %205 = vmatprep.subr.mxu0 0.0
    %206 = vmatpush2.msra.mxu0 0.0
    %207 = vmatprep.subr.mxu0 0.0
    %208 = vmatpush2.msra.mxu0 0.0
    %209 = vmatprep.subr.mxu0 0.0
    %210 = vmatpush2.msra.mxu0 0.0
    %211 = vmatprep.subr.mxu0 0.0
    %212 = vmatpush2.msra.mxu0 0.0
    %213 = vmatprep.subr.mxu0 0.0
    %214 = vmatpush2.msra.mxu0 0.0
    %215 = vmatprep.subr.mxu0 0.0
    %216 = vmatpush2.msra.mxu0 0.0
    %217 = vmatprep.subr.mxu0 0.0
    %218 = vmatpush2.msra.mxu0 0.0
    %219 = vmatprep.subr.mxu0 0.0
    %220 = vmatpush2.msra.mxu0 0.0
    %221 = vmatprep.subr.mxu0 0.0
    %222 = vmatpush2.msra.mxu0 0.0
    %223 = vmatprep.subr.mxu0 0.0
    %224 = vmatpush2.msra.mxu0 0.0
    %225 = vmatprep.mubr.f32.mxu0 0.0
    %v226 = vand.u32 %v59, 4294901760
    %227 = vmatmul.mubr.f32.gmra.mxu0 %v226
    %v228 = vpop.f32.mrf.mxu0
    %v229 = vadd.f32 %v137, %v228
    %v230 = vpop.f32.mrf.mxu0
    %v231 = vadd.f32 %v139, %v230
    %232 = vdwg.mxu0
    %233 = vmatprep.subr.mxu0 0.0
    %234 = vmatpush1.msra.mxu0 0.0
    %235 = vmatprep.subr.mxu0 0.0
    %236 = vmatpush1.msra.mxu0 0.0
    %237 = vmatprep.subr.mxu0 0.0
    %238 = vmatpush1.msra.mxu0 0.0
    %239 = vmatprep.subr.mxu0 0.0
    %240 = vmatpush1.msra.mxu0 0.0
    %241 = vmatprep.subr.mxu0 0.0
    %242 = vmatpush1.msra.mxu0 0.0
    %243 = vmatprep.subr.mxu0 0.0
    %244 = vmatpush1.msra.mxu0 0.0
    %245 = vmatprep.subr.mxu0 0.0
    %246 = vmatpush1.msra.mxu0 0.0
    %247 = vmatprep.subr.mxu0 0.0
    %248 = vmatpush1.msra.mxu0 0.0
    %249 = vmatprep.subr.mxu0 0.0
    %250 = vmatpush1.msra.mxu0 0.0
    %251 = vmatprep.subr.mxu0 0.0
    %252 = vmatpush1.msra.mxu0 0.0
    %253 = vmatprep.subr.mxu0 0.0
    %254 = vmatpush1.msra.mxu0 0.0
    %255 = vmatprep.subr.mxu0 0.0
    %256 = vmatpush1.msra.mxu0 0.0
    %257 = vmatprep.subr.mxu0 0.0
    %258 = vmatpush1.msra.mxu0 0.0
    %259 = vmatprep.subr.mxu0 0.0
    %260 = vmatpush1.msra.mxu0 0.0
    %v261 = vand.u32 %v56, 4294901760
    %v262 = vsub.f32 %v56, %v261
    %263 = vmatprep.subr.mxu0 %v262
    %v264 = vand.u32 %v55, 4294901760
    %v265 = vsub.f32 %v55, %v264
    %266 = vmatpush1.msra.mxu0 %v265
    %v267 = vand.u32 %v54, 4294901760
    %v268 = vsub.f32 %v54, %v267
    %269 = vmatprep.subr.mxu0 %v268
    %v270 = vand.u32 %v53, 4294901760
    %v271 = vsub.f32 %v53, %v270
    %272 = vmatpush1.msra.mxu0 %v271
    %273 = vmatprep.subr.mxu0 0.0
    %274 = vmatpush2.msra.mxu0 0.0
    %275 = vmatprep.subr.mxu0 0.0
    %276 = vmatpush2.msra.mxu0 0.0
    %277 = vmatprep.subr.mxu0 0.0
    %278 = vmatpush2.msra.mxu0 0.0
    %279 = vmatprep.subr.mxu0 0.0
    %280 = vmatpush2.msra.mxu0 0.0
    %281 = vmatprep.subr.mxu0 0.0
    %282 = vmatpush2.msra.mxu0 0.0
    %283 = vmatprep.subr.mxu0 0.0
    %284 = vmatpush2.msra.mxu0 0.0
    %285 = vmatprep.subr.mxu0 0.0
    %286 = vmatpush2.msra.mxu0 0.0
    %287 = vmatprep.subr.mxu0 0.0
    %288 = vmatpush2.msra.mxu0 0.0
    %289 = vmatprep.subr.mxu0 0.0
    %290 = vmatpush2.msra.mxu0 0.0
    %291 = vmatprep.subr.mxu0 0.0
    %292 = vmatpush2.msra.mxu0 0.0
    %293 = vmatprep.subr.mxu0 0.0
    %294 = vmatpush2.msra.mxu0 0.0
    %295 = vmatprep.subr.mxu0 0.0
    %296 = vmatpush2.msra.mxu0 0.0
    %297 = vmatprep.subr.mxu0 0.0
    %298 = vmatpush2.msra.mxu0 0.0
    %299 = vmatprep.subr.mxu0 0.0
    %300 = vmatpush2.msra.mxu0 0.0
    %301 = vmatprep.subr.mxu0 0.0
    %302 = vmatpush2.msra.mxu0 0.0
    %303 = vmatprep.subr.mxu0 0.0
    %304 = vmatpush2.msra.mxu0 0.0
    %305 = vmatprep.mubr.f32.mxu0 0.0
    %v306 = vand.u32 %v59, 4294901760
    %v307 = vsub.f32 %v59, %v306
    %308 = vmatmul.mubr.f32.gmra.mxu0 %v307
    %v309 = vpop.f32.mrf.mxu0
    %v310 = vadd.f32 %v229, %v309
    %v311 = vpop.f32.mrf.mxu0
    %v312 = vadd.f32 %v231, %v311
    %313 = vdwg.mxu0
    %314 = vmatprep.subr.mxu0 0.0
    %315 = vmatpush1.msra.mxu0 0.0
    %316 = vmatprep.subr.mxu0 0.0
    %317 = vmatpush1.msra.mxu0 0.0
    %318 = vmatprep.subr.mxu0 0.0
    %319 = vmatpush1.msra.mxu0 0.0
    %320 = vmatprep.subr.mxu0 0.0
    %321 = vmatpush1.msra.mxu0 0.0
    %322 = vmatprep.subr.mxu0 0.0
    %323 = vmatpush1.msra.mxu0 0.0
    %324 = vmatprep.subr.mxu0 0.0
    %325 = vmatpush1.msra.mxu0 0.0
    %326 = vmatprep.subr.mxu0 0.0
    %327 = vmatpush1.msra.mxu0 0.0
    %328 = vmatprep.subr.mxu0 0.0
    %329 = vmatpush1.msra.mxu0 0.0
    %330 = vmatprep.subr.mxu0 0.0
    %331 = vmatpush1.msra.mxu0 0.0
    %332 = vmatprep.subr.mxu0 0.0
    %333 = vmatpush1.msra.mxu0 0.0
    %334 = vmatprep.subr.mxu0 0.0
    %335 = vmatpush1.msra.mxu0 0.0
    %336 = vmatprep.subr.mxu0 0.0
    %337 = vmatpush1.msra.mxu0 0.0
    %338 = vmatprep.subr.mxu0 0.0
    %339 = vmatpush1.msra.mxu0 0.0
    %340 = vmatprep.subr.mxu0 0.0
    %341 = vmatpush1.msra.mxu0 0.0
    %v342 = vand.u32 %v56, 4294901760
    %343 = vmatprep.subr.mxu0 %v342
    %v344 = vand.u32 %v55, 4294901760
    %345 = vmatpush1.msra.mxu0 %v344
    %v346 = vand.u32 %v54, 4294901760
    %347 = vmatprep.subr.mxu0 %v346
    %v348 = vand.u32 %v53, 4294901760
    %349 = vmatpush1.msra.mxu0 %v348
    %350 = vmatprep.subr.mxu0 0.0
    %351 = vmatpush2.msra.mxu0 0.0
    %352 = vmatprep.subr.mxu0 0.0
    %353 = vmatpush2.msra.mxu0 0.0
    %354 = vmatprep.subr.mxu0 0.0
    %355 = vmatpush2.msra.mxu0 0.0
    %356 = vmatprep.subr.mxu0 0.0
    %357 = vmatpush2.msra.mxu0 0.0
    %358 = vmatprep.subr.mxu0 0.0
    %359 = vmatpush2.msra.mxu0 0.0
    %360 = vmatprep.subr.mxu0 0.0
    %361 = vmatpush2.msra.mxu0 0.0
    %362 = vmatprep.subr.mxu0 0.0
    %363 = vmatpush2.msra.mxu0 0.0
    %364 = vmatprep.subr.mxu0 0.0
    %365 = vmatpush2.msra.mxu0 0.0
    %366 = vmatprep.subr.mxu0 0.0
    %367 = vmatpush2.msra.mxu0 0.0
    %368 = vmatprep.subr.mxu0 0.0
    %369 = vmatpush2.msra.mxu0 0.0
    %370 = vmatprep.subr.mxu0 0.0
    %371 = vmatpush2.msra.mxu0 0.0
    %372 = vmatprep.subr.mxu0 0.0
    %373 = vmatpush2.msra.mxu0 0.0
    %374 = vmatprep.subr.mxu0 0.0
    %375 = vmatpush2.msra.mxu0 0.0
    %376 = vmatprep.subr.mxu0 0.0
    %377 = vmatpush2.msra.mxu0 0.0
    %378 = vmatprep.subr.mxu0 0.0
    %379 = vmatpush2.msra.mxu0 0.0
    %380 = vmatprep.subr.mxu0 0.0
    %381 = vmatpush2.msra.mxu0 0.0
    %382 = vmatprep.mubr.f32.mxu0 0.0
    %v383 = vand.u32 %v59, 4294901760
    %v384 = vsub.f32 %v59, %v383
    %v385 = vand.u32 %v384, 4294901760
    %386 = vmatmul.mubr.f32.gmra.mxu0 %v385
    %v387 = vpop.f32.mrf.mxu0
    %v388 = vadd.f32 %v310, %v387
    %v389 = vpop.f32.mrf.mxu0
    %v390 = vadd.f32 %v312, %v389
    %391 = vdwg.mxu0
    %392 = vmatprep.subr.mxu0 0.0
    %393 = vmatpush1.msra.mxu0 0.0
    %394 = vmatprep.subr.mxu0 0.0
    %395 = vmatpush1.msra.mxu0 0.0
    %396 = vmatprep.subr.mxu0 0.0
    %397 = vmatpush1.msra.mxu0 0.0
    %398 = vmatprep.subr.mxu0 0.0
    %399 = vmatpush1.msra.mxu0 0.0
    %400 = vmatprep.subr.mxu0 0.0
    %401 = vmatpush1.msra.mxu0 0.0
    %402 = vmatprep.subr.mxu0 0.0
    %403 = vmatpush1.msra.mxu0 0.0
    %404 = vmatprep.subr.mxu0 0.0
    %405 = vmatpush1.msra.mxu0 0.0
    %406 = vmatprep.subr.mxu0 0.0
    %407 = vmatpush1.msra.mxu0 0.0
    %408 = vmatprep.subr.mxu0 0.0
    %409 = vmatpush1.msra.mxu0 0.0
    %410 = vmatprep.subr.mxu0 0.0
    %411 = vmatpush1.msra.mxu0 0.0
    %412 = vmatprep.subr.mxu0 0.0
    %413 = vmatpush1.msra.mxu0 0.0
    %414 = vmatprep.subr.mxu0 0.0
    %415 = vmatpush1.msra.mxu0 0.0
    %416 = vmatprep.subr.mxu0 0.0
    %417 = vmatpush1.msra.mxu0 0.0
    %418 = vmatprep.subr.mxu0 0.0
    %419 = vmatpush1.msra.mxu0 0.0
    %v420 = vand.u32 %v56, 4294901760
    %v421 = vsub.f32 %v56, %v420
    %v422 = vand.u32 %v421, 4294901760
    %423 = vmatprep.subr.mxu0 %v422
    %v424 = vand.u32 %v55, 4294901760
    %v425 = vsub.f32 %v55, %v424
    %v426 = vand.u32 %v425, 4294901760
    %427 = vmatpush1.msra.mxu0 %v426
    %v428 = vand.u32 %v54, 4294901760
    %v429 = vsub.f32 %v54, %v428
    %v430 = vand.u32 %v429, 4294901760
    %431 = vmatprep.subr.mxu0 %v430
    %v432 = vand.u32 %v53, 4294901760
    %v433 = vsub.f32 %v53, %v432
    %v434 = vand.u32 %v433, 4294901760
    %435 = vmatpush1.msra.mxu0 %v434
    %436 = vmatprep.subr.mxu0 0.0
    %437 = vmatpush2.msra.mxu0 0.0
    %438 = vmatprep.subr.mxu0 0.0
    %439 = vmatpush2.msra.mxu0 0.0
    %440 = vmatprep.subr.mxu0 0.0
    %441 = vmatpush2.msra.mxu0 0.0
    %442 = vmatprep.subr.mxu0 0.0
    %443 = vmatpush2.msra.mxu0 0.0
    %444 = vmatprep.subr.mxu0 0.0
    %445 = vmatpush2.msra.mxu0 0.0
    %446 = vmatprep.subr.mxu0 0.0
    %447 = vmatpush2.msra.mxu0 0.0
    %448 = vmatprep.subr.mxu0 0.0
    %449 = vmatpush2.msra.mxu0 0.0
    %450 = vmatprep.subr.mxu0 0.0
    %451 = vmatpush2.msra.mxu0 0.0
    %452 = vmatprep.subr.mxu0 0.0
    %453 = vmatpush2.msra.mxu0 0.0
    %454 = vmatprep.subr.mxu0 0.0
    %455 = vmatpush2.msra.mxu0 0.0
    %456 = vmatprep.subr.mxu0 0.0
    %457 = vmatpush2.msra.mxu0 0.0
    %458 = vmatprep.subr.mxu0 0.0
    %459 = vmatpush2.msra.mxu0 0.0
    %460 = vmatprep.subr.mxu0 0.0
    %461 = vmatpush2.msra.mxu0 0.0
    %462 = vmatprep.subr.mxu0 0.0
    %463 = vmatpush2.msra.mxu0 0.0
    %464 = vmatprep.subr.mxu0 0.0
    %465 = vmatpush2.msra.mxu0 0.0
    %466 = vmatprep.subr.mxu0 0.0
    %467 = vmatpush2.msra.mxu0 0.0
    %468 = vmatprep.mubr.f32.mxu0 0.0
    %v469 = vand.u32 %v59, 4294901760
    %470 = vmatmul.mubr.f32.gmra.mxu0 %v469
    %v471 = vpop.f32.mrf.mxu0
    %v472 = vadd.f32 %v388, %v471
    %v473 = vpop.f32.mrf.mxu0
    %v474 = vadd.f32 %v390, %v473
    %475 = vdwg.mxu0
    %476 = vmatprep.subr.mxu0 0.0
    %477 = vmatpush1.msra.mxu0 0.0
    %478 = vmatprep.subr.mxu0 0.0
    %479 = vmatpush1.msra.mxu0 0.0
    %480 = vmatprep.subr.mxu0 0.0
    %481 = vmatpush1.msra.mxu0 0.0
    %482 = vmatprep.subr.mxu0 0.0
    %483 = vmatpush1.msra.mxu0 0.0
    %484 = vmatprep.subr.mxu0 0.0
    %485 = vmatpush1.msra.mxu0 0.0
    %486 = vmatprep.subr.mxu0 0.0
    %487 = vmatpush1.msra.mxu0 0.0
    %488 = vmatprep.subr.mxu0 0.0
    %489 = vmatpush1.msra.mxu0 0.0
    %490 = vmatprep.subr.mxu0 0.0
    %491 = vmatpush1.msra.mxu0 0.0
    %492 = vmatprep.subr.mxu0 0.0
    %493 = vmatpush1.msra.mxu0 0.0
    %494 = vmatprep.subr.mxu0 0.0
    %495 = vmatpush1.msra.mxu0 0.0
    %496 = vmatprep.subr.mxu0 0.0
    %497 = vmatpush1.msra.mxu0 0.0
    %498 = vmatprep.subr.mxu0 0.0
    %499 = vmatpush1.msra.mxu0 0.0
    %500 = vmatprep.subr.mxu0 0.0
    %501 = vmatpush1.msra.mxu0 0.0
    %502 = vmatprep.subr.mxu0 0.0
    %503 = vmatpush1.msra.mxu0 0.0
    %v504 = vand.u32 %v56, 4294901760
    %505 = vmatprep.subr.mxu0 %v504
    %v506 = vand.u32 %v55, 4294901760
    %507 = vmatpush1.msra.mxu0 %v506
    %v508 = vand.u32 %v54, 4294901760
    %509 = vmatprep.subr.mxu0 %v508
    %v510 = vand.u32 %v53, 4294901760
    %511 = vmatpush1.msra.mxu0 %v510
    %512 = vmatprep.subr.mxu0 0.0
    %513 = vmatpush2.msra.mxu0 0.0
    %514 = vmatprep.subr.mxu0 0.0
    %515 = vmatpush2.msra.mxu0 0.0
    %516 = vmatprep.subr.mxu0 0.0
    %517 = vmatpush2.msra.mxu0 0.0
    %518 = vmatprep.subr.mxu0 0.0
    %519 = vmatpush2.msra.mxu0 0.0
    %520 = vmatprep.subr.mxu0 0.0
    %521 = vmatpush2.msra.mxu0 0.0
    %522 = vmatprep.subr.mxu0 0.0
    %523 = vmatpush2.msra.mxu0 0.0
    %524 = vmatprep.subr.mxu0 0.0
    %525 = vmatpush2.msra.mxu0 0.0
    %526 = vmatprep.subr.mxu0 0.0
    %527 = vmatpush2.msra.mxu0 0.0
    %528 = vmatprep.subr.mxu0 0.0
    %529 = vmatpush2.msra.mxu0 0.0
    %530 = vmatprep.subr.mxu0 0.0
    %531 = vmatpush2.msra.mxu0 0.0
    %532 = vmatprep.subr.mxu0 0.0
    %533 = vmatpush2.msra.mxu0 0.0
    %534 = vmatprep.subr.mxu0 0.0
    %535 = vmatpush2.msra.mxu0 0.0
    %536 = vmatprep.subr.mxu0 0.0
    %537 = vmatpush2.msra.mxu0 0.0
    %538 = vmatprep.subr.mxu0 0.0
    %539 = vmatpush2.msra.mxu0 0.0
    %540 = vmatprep.subr.mxu0 0.0
    %541 = vmatpush2.msra.mxu0 0.0
    %542 = vmatprep.subr.mxu0 0.0
    %543 = vmatpush2.msra.mxu0 0.0
    %544 = vmatprep.mubr.f32.mxu0 0.0
    %v545 = vand.u32 %v59, 4294901760
    %546 = vmatmul.mubr.f32.gmra.mxu0 %v545
    %v547 = vpop.f32.mrf.mxu0
    %v548 = vadd.f32 %v472, %v547
    %v549 = vpop.f32.mrf.mxu0
    %v550 = vadd.f32 %v474, %v549
    %551 = vdwg.mxu0
    %v552 = vld [vmem:[#allocation7] sm:$0xff]
    %v554 = vlaneseq
    %v555 = vshrl.u32 %v554, 7
    %v556 = vsub.s32 0, %v555
    %v557 = vrot.slane %v552, %v556
    %v558 = vlaneseq
    %v559 = vshrl.u32 %v558, 7
    %v560 = vsub.s32 4, %v559
    %v561 = vrot.slane %v552, %v560
    %v564 = vlaneseq
    %v565 = vshrl.u32 %v564, 7
    %v566 = vsub.s32 0, %v565
    %v567 = vrot.slane %v557, %v566
    %v568 = vlaneseq
    %v569 = vshrl.u32 %v568, 7
    %v570 = vsub.s32 0, %v569
    %v571 = vrot.slane %v561, %v570
    %v572 = vmul.f32 %v548, %v567
    %v573 = vmul.f32 %v550, %v571
    %v574 = vlaneseq
    %v575 = vshrl.u32 %v574, 7
    %v576 = vsub.s32 1, %v575
    %v577 = vrot.slane %v552, %v576
    %v578 = vlaneseq
    %v579 = vshrl.u32 %v578, 7
    %v580 = vsub.s32 5, %v579
    %v581 = vrot.slane %v552, %v580
    %v584 = vlaneseq
    %v585 = vshrl.u32 %v584, 7
    %v586 = vsub.s32 1, %v585
    %v587 = vrot.slane %v577, %v586
    %v588 = vlaneseq
    %v589 = vshrl.u32 %v588, 7
    %v590 = vsub.s32 1, %v589
    %v591 = vrot.slane %v581, %v590
    %v592 = vadd.f32 %v572, %v587
    %v593 = vadd.f32 %v573, %v591
    %v594 = vand.u32 2147483647, %v592
    %vm595 = vcmp.le.f32.partialorder %v594, 0.7853982
    %vm596 = vcmp.lt.s32.totalorder %v592, 0
    %v597 = vand.u32 %v592, 2139095040
    %v598 = vshrl.u32 %v597, 23
    %v599 = vsub.s32 %v598, 127
    %v600 = vand.u32 2147483647, %v592
    %v601 = vand.u32 %v600, 8388607
    %v602 = vor.u32 %v601, 8388608
    %v603 = vsub.s32 0, %v602
    %v604 = vadd.s32 %v599, 1
    %vm605 = vcmp.gt.s32.totalorder %v604, 0
    %v606 = vsel %vm605, %v604, 0
    %v607 = vshrl.u32 %v606, 5
    %v608 = vand.u32 %v606, 31
    %v609 = vsub.s32 32, %v608
    %v610 = vshrl.u32 683565275, %v609
    %v611 = vshll.u32 683565275, %v608
    %v612 = vshrl.u32 2475754826, %v609
    %v613 = vor.u32 %v611, %v612
    %v614 = vshll.u32 2475754826, %v608
    %v615 = vshrl.u32 2131351028, %v609
    %v616 = vor.u32 %v614, %v615
    %v617 = vshll.u32 2131351028, %v608
    %v618 = vshrl.u32 2102212464, %v609
    %v619 = vor.u32 %v617, %v618
    %v620 = vshll.u32 2102212464, %v608
    %v621 = vshrl.u32 920167782, %v609
    %v622 = vor.u32 %v620, %v621
    %v623 = vshll.u32 920167782, %v608
    %v624 = vshrl.u32 1326507024, %v609
    %v625 = vor.u32 %v623, %v624
    %vm626 = vcmp.lt.s32.totalorder %v607, 1
    %vm627 = vcmp.lt.s32.totalorder %v607, 2
    %vm628 = vcmp.lt.s32.totalorder %v607, 3
    %vm629 = vcmp.lt.s32.totalorder %v607, 4
    %v630 = vsel %vm626, %v610, %v613
    %v631 = vsel %vm629, %v619, 2102212464
    %v632 = vsel %vm628, %v616, %v631
    %v633 = vsel %vm627, %v630, %v632
    %v634 = vsel %vm626, %v613, %v616
    %v635 = vsel %vm629, %v622, 920167782
    %v636 = vsel %vm628, %v619, %v635
    %v637 = vsel %vm627, %v634, %v636
    %v638 = vsel %vm626, %v616, %v619
    %v639 = vsel %vm629, %v625, 1326507024
    %v640 = vsel %vm628, %v622, %v639
    %v641 = vsel %vm627, %v638, %v640
    %v642 = vshll.u32 %v602, 8
    %v643 = vmul.u32.u64.compose %v642, %v641
    %v644 = vextract.low.u32 %v643
    %v645 = vextract.high.u32 %v643
    %v646 = vmul.u32.u64.compose %v642, %v637
    %v647 = vextract.low.u32 %v646
    %v648 = vextract.high.u32 %v646
    %v649 = vmul.u32 %v642, %v633
    %v650 = vadd.s32 %v645, %v647
    %vm651 = vc.u32 %v645, %v647
    %v652 = vadd.s32 %v648, 1
    %v653 = vsel %vm651, %v652, %v648
    %v654 = vadd.s32 %v649, %v653
    %v655 = vadd.s32 %v654, 536870912
    %v656 = vshrl.u32 %v655, 30
    %v657 = vshll.u32 %v656, 30
    %v658 = vsub.s32 %v654, %v657
    %vm659 = vcmp.lt.s32.totalorder %v658, 0
    %v660 = vsub.s32 0, %v658
    %v661 = vsel %vm659, %v660, %v658
    %v662 = vclz %v661
    %v663 = vsub.s32 %v662, 2
    %vm664 = vcmp.gt.s32.totalorder 0, %v663
    %v665 = vsel %vm664, 0, %v663
    %v666 = vsub.s32 32, %v665
    %v667 = vshll.u32 %v658, %v665
    %v668 = vshrl.u32 %v650, %v666
    %v669 = vor.u32 %v667, %v668
    %v670 = vsub.s32 4294967266, %v665
    %v671 = vadd.s32 %v670, 127
    %v672 = vshll.u32 %v671, 23
    %v673 = vor.u32 4788187, %v672
    %v674 = vand.u32 2147483647, %v673
    %v676 = vcvt.s32.f32 %v669
    %v677 = vmul.f32 %v676, %v674
    %v678 = vxor.u32 %v677, 2147483648
    %v679 = vsel %vm596, %v678, %v677
    %v680 = vsub.s32 4, %v656
    %v681 = vsel %vm596, %v680, %v656
    %v682 = vsel %vm595, %v592, %v679
    %v683 = vsel %vm595, 0, %v681
    %v684 = vcosq.f32.pop %v682
    %v685 = vsinq.f32.pop %v682
    %vm686 = vweird.f32 %v592
    %v687 = vadd.s32 %v683, 3
    %v688 = vand.u32 %v687, 3
    %vm689 = vcmp.lt.s32.totalorder %v688, 2
    %vm690 = vcmp.eq.s32.totalorder %v688, 0
    %v691 = vxor.u32 %v685, 2147483648
    %v692 = vsel %vm690, %v684, %v691
    %vm693 = vcmp.eq.s32.totalorder %v688, 2
    %v694 = vxor.u32 %v684, 2147483648
    %v695 = vsel %vm693, %v694, %v685
    %v696 = vsel %vm689, %v692, %v695
    %v697 = vsel %vm686, nan, %v696
    %v698 = vand.u32 2147483647, %v593
    %vm699 = vcmp.le.f32.partialorder %v698, 0.7853982
    %vm700 = vcmp.lt.s32.totalorder %v593, 0
    %v701 = vand.u32 %v593, 2139095040
    %v702 = vshrl.u32 %v701, 23
    %v703 = vsub.s32 %v702, 127
    %v704 = vand.u32 2147483647, %v593
    %v705 = vand.u32 %v704, 8388607
    %v706 = vor.u32 %v705, 8388608
    %v707 = vsub.s32 0, %v706
    %v708 = vadd.s32 %v703, 1
    %vm709 = vcmp.gt.s32.totalorder %v708, 0
    %v710 = vsel %vm709, %v708, 0
    %v711 = vshrl.u32 %v710, 5
    %v712 = vand.u32 %v710, 31
    %v713 = vsub.s32 32, %v712
    %v714 = vshrl.u32 683565275, %v713
    %v715 = vshll.u32 683565275, %v712
    %v716 = vshrl.u32 2475754826, %v713
    %v717 = vor.u32 %v715, %v716
    %v718 = vshll.u32 2475754826, %v712
    %v719 = vshrl.u32 2131351028, %v713
    %v720 = vor.u32 %v718, %v719
    %v721 = vshll.u32 2131351028, %v712
    %v722 = vshrl.u32 2102212464, %v713
    %v723 = vor.u32 %v721, %v722
    %v724 = vshll.u32 2102212464, %v712
    %v725 = vshrl.u32 920167782, %v713
    %v726 = vor.u32 %v724, %v725
    %v727 = vshll.u32 920167782, %v712
    %v728 = vshrl.u32 1326507024, %v713
    %v729 = vor.u32 %v727, %v728
    %vm730 = vcmp.lt.s32.totalorder %v711, 1
    %vm731 = vcmp.lt.s32.totalorder %v711, 2
    %vm732 = vcmp.lt.s32.totalorder %v711, 3
    %vm733 = vcmp.lt.s32.totalorder %v711, 4
    %v734 = vsel %vm730, %v714, %v717
    %v735 = vsel %vm733, %v723, 2102212464
    %v736 = vsel %vm732, %v720, %v735
    %v737 = vsel %vm731, %v734, %v736
    %v738 = vsel %vm730, %v717, %v720
    %v739 = vsel %vm733, %v726, 920167782
    %v740 = vsel %vm732, %v723, %v739
    %v741 = vsel %vm731, %v738, %v740
    %v742 = vsel %vm730, %v720, %v723
    %v743 = vsel %vm733, %v729, 1326507024
    %v744 = vsel %vm732, %v726, %v743
    %v745 = vsel %vm731, %v742, %v744
    %v746 = vshll.u32 %v706, 8
    %v747 = vmul.u32.u64.compose %v746, %v745
    %v748 = vextract.low.u32 %v747
    %v749 = vextract.high.u32 %v747
    %v750 = vmul.u32.u64.compose %v746, %v741
    %v751 = vextract.low.u32 %v750
    %v752 = vextract.high.u32 %v750
    %v753 = vmul.u32 %v746, %v737
    %v754 = vadd.s32 %v749, %v751
    %vm755 = vc.u32 %v749, %v751
    %v756 = vadd.s32 %v752, 1
    %v757 = vsel %vm755, %v756, %v752
    %v758 = vadd.s32 %v753, %v757
    %v759 = vadd.s32 %v758, 536870912
    %v760 = vshrl.u32 %v759, 30
    %v761 = vshll.u32 %v760, 30
    %v762 = vsub.s32 %v758, %v761
    %vm763 = vcmp.lt.s32.totalorder %v762, 0
    %v764 = vsub.s32 0, %v762
    %v765 = vsel %vm763, %v764, %v762
    %v766 = vclz %v765
    %v767 = vsub.s32 %v766, 2
    %vm768 = vcmp.gt.s32.totalorder 0, %v767
    %v769 = vsel %vm768, 0, %v767
    %v770 = vsub.s32 32, %v769
    %v771 = vshll.u32 %v762, %v769
    %v772 = vshrl.u32 %v754, %v770
    %v773 = vor.u32 %v771, %v772
    %v774 = vsub.s32 4294967266, %v769
    %v775 = vadd.s32 %v774, 127
    %v776 = vshll.u32 %v775, 23
    %v777 = vor.u32 4788187, %v776
    %v778 = vand.u32 2147483647, %v777
    %v780 = vcvt.s32.f32 %v773
    %v781 = vmul.f32 %v780, %v778
    %v782 = vxor.u32 %v781, 2147483648
    %v783 = vsel %vm700, %v782, %v781
    %v784 = vsub.s32 4, %v760
    %v785 = vsel %vm700, %v784, %v760
    %v786 = vsel %vm699, %v593, %v783
    %v787 = vsel %vm699, 0, %v785
    %v788 = vcosq.f32.pop %v786
    %v789 = vsinq.f32.pop %v786
    %vm790 = vweird.f32 %v593
    %v791 = vadd.s32 %v787, 3
    %v792 = vand.u32 %v791, 3
    %vm793 = vcmp.lt.s32.totalorder %v792, 2
    %vm794 = vcmp.eq.s32.totalorder %v792, 0
    %v795 = vxor.u32 %v789, 2147483648
    %v796 = vsel %vm794, %v788, %v795
    %vm797 = vcmp.eq.s32.totalorder %v792, 2
    %v798 = vxor.u32 %v788, 2147483648
    %v799 = vsel %vm797, %v798, %v789
    %v800 = vsel %vm793, %v796, %v799
    %v801 = vsel %vm790, nan, %v800
    %v802 = vlaneseq
    %v803 = vshrl.u32 %v802, 7
    %v804 = vsub.s32 2, %v803
    %v805 = vrot.slane %v552, %v804
    %v806 = vlaneseq
    %v807 = vshrl.u32 %v806, 7
    %v808 = vsub.s32 6, %v807
    %v809 = vrot.slane %v552, %v808
    %v812 = vlaneseq
    %v813 = vshrl.u32 %v812, 7
    %v814 = vsub.s32 2, %v813
    %v815 = vrot.slane %v805, %v814
    %v816 = vlaneseq
    %v817 = vshrl.u32 %v816, 7
    %v818 = vsub.s32 2, %v817
    %v819 = vrot.slane %v809, %v818
    %v820 = vmul.f32 %v697, %v815
    %v821 = vmul.f32 %v801, %v819
    %vm822 = vcmp.gt.f32.partialorder %v552, 0.5
    %v823 = vsel %vm822, 1, 0
    %v824 = vlaneseq
    %v825 = vshrl.u32 %v824, 7
    %v826 = vsub.s32 3, %v825
    %v827 = vrot.slane %v823, %v826
    %v828 = vlaneseq
    %v829 = vshrl.u32 %v828, 7
    %v830 = vsub.s32 7, %v829
    %v831 = vrot.slane %v823, %v830
    %v832 = vlaneseq
    %v833 = vshrl.u32 %v832, 7
    %v834 = vsub.s32 3, %v833
    %v835 = vrot.slane %v827, %v834
    %v836 = vlaneseq
    %v837 = vshrl.u32 %v836, 7
    %v838 = vsub.s32 3, %v837
    %v839 = vrot.slane %v831, %v838
    %vm840 = vcmp.eq.s32.totalorder %v835, 1
    %vm841 = vcmp.eq.s32.totalorder %v839, 1
    %v842 = vsel %vm840, %v548, %v820
    %v843 = vsel %vm841, %v550, %v821
    %844 = vst [vmem:[#allocation8] sm:$0xff] %v842
    %vm845 = vcmask 654336
    %846 = vst.msk [vmem:[#allocation8 + $0x8] sm:$0xff] %vm845, %v843
    // Predicated region
    $region26: #{tpu_custom_call.1} parent=1 // pred_check
      _
    $region27: #{tpu_custom_call.1} parent=1 // pred_check_branch
      %848 = sbr.rel (0) target = $region29
    $region28: #{tpu_custom_call.1} parent=1 // pred_region
      %s850 = ssub.s32 256, 256
      %851 = vsyncadd [#allocation4], %s850
      %s853 = sshll.u32 [#allocation8], 4
      %s854 = int_to_ptr.vmem [resolvable:$true] %s853
      %856 = dma.vmem_to_hbm [thread:$0]  %s854, 256, %s3, [#allocation4]
    $region29: #{tpu_custom_call.1} parent=1 // pred_fallthru
      _
    // Predicated region
    $region30: #{tpu_custom_call.1} parent=1 // pred_check
      _
    $region31: #{tpu_custom_call.1} parent=1 // pred_check_branch
      %858 = sbr.rel (0) target = $region33
    $region32: #{tpu_custom_call.1} parent=1 // pred_region
      %859 = dma.done [#allocation4], 256
    $region33: #{tpu_custom_call.1} parent=1 // pred_fallthru
      _
    %860 = vsyncpa [#allocation3], 1
    %861 = vsyncpa [#allocation6], 1
    %862 = vsyncpa [#allocation4], 1

</llo_original>
